<compile_context>
chip_gen: v5e
topology: v5e:2x2
jax: 0.10.0
libtpu: 0.0.40
codegen_flags: <defaults>
</compile_context>

<pallas_src>
import math

import jax
import jax.numpy as jnp
from jax.experimental import pallas as pl
from jax.experimental.pallas import tpu as pltpu

LANE = 128
SUBLANE = 8


def _round_up(x, m):
    return ((x + m - 1) // m) * m


def _pad2d(a, rows, cols):
    r, c = a.shape
    if r == rows and c == cols:
        return a
    return jnp.pad(a, ((0, rows - r), (0, cols - c)))


# ---------------- fused kernel (small graphs: one launch, no HBM support) ---
def _make_fused_kernel(has_bias, compute_dtype):
    def kernel(*refs):
        if has_bias:
            x_ref, w_ref, adj_ref, b_ref, o_ref = refs
        else:
            x_ref, w_ref, adj_ref, o_ref = refs
            b_ref = None
        support = jnp.dot(x_ref[...], w_ref[...],
                          preferred_element_type=jnp.float32)
        support = support.astype(compute_dtype)
        out = jnp.dot(adj_ref[...].astype(compute_dtype), support,
                      preferred_element_type=jnp.float32)
        if has_bias:
            out = out + b_ref[...]
        o_ref[...] = out.astype(o_ref.dtype)

    return kernel


# ---------------- kernel 1: support = X @ W (row tiled, W resident) ---------
def _support_kernel(x_ref, w_ref, s_ref):
    s_ref[...] = jnp.dot(
        x_ref[...], w_ref[...], preferred_element_type=jnp.float32
    ).astype(s_ref.dtype)


# ---------------- kernel 2: out = A @ support (+ bias) ----------------------
def _make_adj_kernel(has_bias, direct_acc, resident_support, tk, compute_dtype):
    """Builds the adj-matmul kernel body for the given (trace-time) config.

    Ref order: adj, support, [bias], out, [acc scratch (only if not direct_acc)].
    """

    def kernel(*refs):
        idx = 0
        adj_ref = refs[idx]; idx += 1
        s_ref = refs[idx]; idx += 1
        b_ref = None
        if has_bias:
            b_ref = refs[idx]; idx += 1
        o_ref = refs[idx]; idx += 1
        acc_ref = o_ref if direct_acc else refs[idx]

        k = pl.program_id(1)

        @pl.when(k == 0)
        def _init():
            acc_ref[...] = jnp.zeros_like(acc_ref)

        # Cast the adj tile to the MXU compute dtype here (no XLA pre-pass).
        a = adj_ref[...].astype(compute_dtype)
        if resident_support:
            start = pl.multiple_of(k * tk, tk)
            s = s_ref[pl.ds(start, tk), :]
        else:
            s = s_ref[...]
        acc_ref[...] += jnp.dot(a, s, preferred_element_type=jnp.float32)

        if not (direct_acc and not has_bias):
            @pl.when(k == pl.num_programs(1) - 1)
            def _finalize():
                if direct_acc:
                    o_ref[...] += b_ref[...]
                else:
                    r = acc_ref[...]
                    if has_bias:
                        r = r + b_ref[...]
                    o_ref[...] = r.astype(o_ref.dtype)

    return kernel


def gcn_forward(x, adj, weight, bias, *, tm=512, tk=2048,
                compute_dtype=jnp.bfloat16, support_resident=None,
                fuse_small=True):
    """GraphConvolution forward.

    x: (N, F_in) node features, adj: (N, N) dense adjacency (spmm densified),
    weight: (F_in, F_out), bias: (F_out,) or None.  Returns (N, F_out)."""
    N, f_in = x.shape
    f_out = weight.shape[1]
    out_dtype = x.dtype
    has_bias = bias is not None

    # Feature dims padded to the 128-lane width (lane-dense vst, full MXU cols).
    f_in_p = _round_up(f_in, LANE)
    f_out_p = _round_up(f_out, LANE)

    cbytes = jnp.dtype(compute_dtype).itemsize
    obytes = jnp.dtype(out_dtype).itemsize
    adj_bytes = jnp.dtype(adj.dtype).itemsize

    # Small operands cast once; adj stays in its incoming dtype (cast per tile
    # inside the kernel).
    x_c = x.astype(compute_dtype)
    w_c = weight.astype(compute_dtype)

    if has_bias:
        b_p = jnp.zeros((1, f_out_p), dtype=jnp.float32)
        b_p = b_p.at[0, :f_out].set(bias.astype(jnp.float32))

    # ---- small-graph fused path: one kernel, support never touches HBM ----
    n_rows_f = _round_up(N, SUBLANE)
    n_cols_f = _round_up(N, LANE)
    fused_bytes = (n_rows_f * n_cols_f * adj_bytes
                   + n_cols_f * f_in_p * cbytes
                   + f_in_p * f_out_p * cbytes
                   + n_cols_f * f_out_p * 4          # support intermediate
                   + n_rows_f * f_out_p * obytes
                   + f_out_p * 4)
    if fuse_small and fused_bytes <= 6 * 1024 * 1024:
        x_p = _pad2d(x_c, n_cols_f, f_in_p)
        w_p = _pad2d(w_c, f_in_p, f_out_p)
        adj_p = _pad2d(adj, n_rows_f, n_cols_f)
        in_specs = [
            pl.BlockSpec((n_cols_f, f_in_p), lambda i: (0, 0)),
            pl.BlockSpec((f_in_p, f_out_p), lambda i: (0, 0)),
            pl.BlockSpec((n_rows_f, n_cols_f), lambda i: (0, 0)),
        ]
        args = [x_p, w_p, adj_p]
        if has_bias:
            in_specs.append(pl.BlockSpec((1, f_out_p), lambda i: (0, 0)))
            args.append(b_p)
        out_p = pl.pallas_call(
            _make_fused_kernel(has_bias, compute_dtype),
            out_shape=jax.ShapeDtypeStruct((n_rows_f, f_out_p), out_dtype),
            grid_spec=pltpu.PrefetchScalarGridSpec(
                num_scalar_prefetch=0,
                grid=(1,),
                in_specs=in_specs,
                out_specs=pl.BlockSpec((n_rows_f, f_out_p), lambda i: (0, 0)),
            ),
            compiler_params=pltpu.CompilerParams(
                dimension_semantics=("arbitrary",),
                vmem_limit_bytes=32 * 1024 * 1024,
            ),
            cost_estimate=pl.CostEstimate(
                flops=2 * n_cols_f * f_in_p * f_out_p
                + 2 * n_rows_f * n_cols_f * f_out_p,
                transcendentals=0,
                bytes_accessed=int(fused_bytes),
            ),
        )(*args)
        return out_p[:N, :f_out]

    # ---- general two-kernel path ----
    tm = max(SUBLANE, min(tm, _round_up(N, SUBLANE)))
    tk = max(LANE, min(tk, _round_up(N, LANE)))
    # Keep >= 2 row tiles for largish graphs so a 2-TC chip (v7x) can split
    # the "parallel" row axis instead of idling one core.
    if N >= 2 * LANE and _round_up(N, tm) // tm < 2:
        tm = _round_up((N + 1) // 2, SUBLANE)
    n_rows = _round_up(N, tm)   # padded rows of adj / output
    n_cols = _round_up(N, tk)   # padded cols of adj == padded rows of X

    x_p = _pad2d(x_c, n_cols, f_in_p)
    w_p = _pad2d(w_c, f_in_p, f_out_p)
    adj_p = _pad2d(adj, n_rows, n_cols)   # same dtype as adj; no-op if aligned

    # --- 1) support = X @ W : computed once, never inside the k-loop ---
    support = pl.pallas_call(
        _support_kernel,
        out_shape=jax.ShapeDtypeStruct((n_cols, f_out_p), compute_dtype),
        grid_spec=pltpu.PrefetchScalarGridSpec(
            num_scalar_prefetch=0,
            grid=(n_cols // tk,),
            in_specs=[
                pl.BlockSpec((tk, f_in_p), lambda i: (i, 0)),
                pl.BlockSpec((f_in_p, f_out_p), lambda i: (0, 0)),  # resident W
            ],
            out_specs=pl.BlockSpec((tk, f_out_p), lambda i: (i, 0)),
        ),
        compiler_params=pltpu.CompilerParams(
            dimension_semantics=("parallel",),
            vmem_limit_bytes=32 * 1024 * 1024,
        ),
        cost_estimate=pl.CostEstimate(
            flops=2 * n_cols * f_in_p * f_out_p,
            transcendentals=0,
            bytes_accessed=(n_cols * f_in_p + f_in_p * f_out_p
                            + n_cols * f_out_p) * cbytes,
        ),
    )(x_p, w_p)

    # --- 2) out = A @ support (+ bias), adj streamed tile by tile ---
    if support_resident is None:
        support_resident = n_cols * f_out_p * cbytes <= 8 * 1024 * 1024
    direct_acc = jnp.dtype(out_dtype) == jnp.dtype(jnp.float32)

    kernel = _make_adj_kernel(has_bias, direct_acc, support_resident, tk,
                              compute_dtype)

    in_specs = [pl.BlockSpec((tm, tk), lambda i, k: (i, k))]
    if support_resident:
        # DMA'd once, stays resident across the whole grid.
        in_specs.append(pl.BlockSpec((n_cols, f_out_p), lambda i, k: (0, 0)))
    else:
        in_specs.append(pl.BlockSpec((tk, f_out_p), lambda i, k: (k, 0)))
    args = [adj_p, support]
    if has_bias:
        in_specs.append(pl.BlockSpec((1, f_out_p), lambda i, k: (0, 0)))
        args.append(b_p)

    scratch_shapes = ([] if direct_acc
                      else [pltpu.VMEM((tm, f_out_p), jnp.float32)])

    n_row_tiles = n_rows // tm
    support_reads = 1 if support_resident else n_row_tiles
    bytes_accessed = (n_rows * n_cols * adj_bytes
                      + support_reads * n_cols * f_out_p * cbytes
                      + n_rows * f_out_p * obytes
                      + (f_out_p * 4 if has_bias else 0))

    out_p = pl.pallas_call(
        kernel,
        out_shape=jax.ShapeDtypeStruct((n_rows, f_out_p), out_dtype),
        grid_spec=pltpu.PrefetchScalarGridSpec(
            num_scalar_prefetch=0,
            grid=(n_row_tiles, n_cols // tk),   # reduction axis last
            in_specs=in_specs,
            out_specs=pl.BlockSpec((tm, f_out_p), lambda i, k: (i, 0)),
            scratch_shapes=scratch_shapes,
        ),
        compiler_params=pltpu.CompilerParams(
            dimension_semantics=("parallel", "arbitrary"),
            vmem_limit_bytes=48 * 1024 * 1024,
        ),
        cost_estimate=pl.CostEstimate(
            flops=2 * n_rows * n_cols * f_out_p,
            transcendentals=0,
            bytes_accessed=int(bytes_accessed),
        ),
    )(*args)

    return out_p[:N, :f_out]


def init_params(key, in_features, out_features):
    """Matches reset_parameters(): U(-stdv, stdv), stdv = 1/sqrt(out_features)."""
    stdv = 1.0 / math.sqrt(out_features)
    kw, kb = jax.random.split(key)
    weight = jax.random.uniform(
        kw, (in_features, out_features), dtype=jnp.float32,
        minval=-stdv, maxval=stdv)
    bias = jax.random.uniform(
        kb, (out_features,), dtype=jnp.float32, minval=-stdv, maxval=stdv)
    return weight, bias


def _reference(x, adj, weight, bias):
    """bf16-operand-consistent reference (fp32 accumulation)."""
    xs = x.astype(jnp.bfloat16).astype(jnp.float32)
    ws = weight.astype(jnp.bfloat16).astype(jnp.float32)
    adjs = adj.astype(jnp.bfloat16).astype(jnp.float32)
    support = jnp.dot(xs, ws, precision=jax.lax.Precision.HIGHEST)
    support = support.astype(jnp.bfloat16).astype(jnp.float32)
    out = jnp.dot(adjs, support, precision=jax.lax.Precision.HIGHEST)
    if bias is not None:
        out = out + bias[None, :].astype(jnp.float32)
    return out


def _make_graph(k_x, k_adj, n, f_in, p=0.1):
    x = jax.random.normal(k_x, (n, f_in), dtype=jnp.float32)
    a = (jax.random.uniform(k_adj, (n, n)) < p).astype(jnp.float32)
    a = jnp.clip(a + a.T + jnp.eye(n, dtype=jnp.float32), 0.0, 1.0)
    adj = a / jnp.sum(a, axis=1, keepdims=True)   # row-normalized, dense spmm
    return x, adj


if __name__ == "__main__":
    key = jax.random.PRNGKey(0)
    k_x, k_adj, k_p, k_x2, k_adj2, k_p2 = jax.random.split(key, 6)

    # ---- primary example (N=64, 16 -> 32): small-graph fused path ----
    N, f_in, f_out = 64, 16, 32
    x, adj = _make_graph(k_x, k_adj, N, f_in)
    weight, bias = init_params(k_p, f_in, f_out)

    out = gcn_forward(x, adj, weight, bias)
    jax.block_until_ready(out)
    assert out.shape == (N, f_out)

    ref = _reference(x, adj, weight, bias)
    err = float(jnp.max(jnp.abs(out - ref)))
    assert jnp.allclose(out, ref, atol=1e-3, rtol=1e-3), err

    ref32 = jnp.dot(adj, jnp.dot(x, weight,
                                 precision=jax.lax.Precision.HIGHEST),
                    precision=jax.lax.Precision.HIGHEST) + bias[None, :]
    assert jnp.allclose(out, ref32, atol=3e-2, rtol=3e-2)

    out_nb = gcn_forward(x, adj, weight, None)
    jax.block_until_ready(out_nb)
    assert jnp.allclose(out_nb, ref - bias[None, :], atol=1e-3, rtol=1e-3)

    # ---- general two-kernel path (forced), with a real k-reduction loop ----
    N2, f_in2, f_out2 = 300, 48, 70
    x2, adj2 = _make_graph(k_x2, k_adj2, N2, f_in2)
    w2, b2 = init_params(k_p2, f_in2, f_out2)
    ref2 = _reference(x2, adj2, w2, b2)

    # resident support + direct fp32 accumulation into the output block
    out2 = gcn_forward(x2, adj2, w2, b2, tm=128, tk=128, fuse_small=False)
    jax.block_until_ready(out2)
    assert out2.shape == (N2, f_out2)
    assert jnp.allclose(out2, ref2, atol=1e-3, rtol=1e-3), float(
        jnp.max(jnp.abs(out2 - ref2)))

    # streamed-support fallback path
    out2s = gcn_forward(x2, adj2, w2, b2, tm=128, tk=128, fuse_small=False,
                        support_resident=False)
    jax.block_until_ready(out2s)
    assert jnp.allclose(out2s, ref2, atol=1e-3, rtol=1e-3)

    # bf16 output -> fp32 scratch accumulation path
    out2b = gcn_forward(x2.astype(jnp.bfloat16), adj2, w2, b2,
                        tm=128, tk=128, fuse_small=False)
    jax.block_until_ready(out2b)
    assert jnp.allclose(out2b.astype(jnp.float32), ref2, atol=3e-2, rtol=3e-2)

    # no-bias on the general path
    out2nb = gcn_forward(x2, adj2, w2, None, tm=128, tk=128, fuse_small=False)
    jax.block_until_ready(out2nb)
    assert jnp.allclose(out2nb, ref2 - b2[None, :], atol=1e-3, rtol=1e-3)

    print("KERNEL_OK")
</pallas_src>

<mosaic_0001>
module attributes {stable_mosaic.version = 11 : i64} {
  func.func @kernel(%arg0: i32, %arg1: memref<128x128xbf16, #tpu.memory_space<vmem>>, %arg2: memref<128x128xbf16, #tpu.memory_space<vmem>>, %arg3: memref<64x128xf32, #tpu.memory_space<vmem>>, %arg4: memref<1x128xf32, #tpu.memory_space<vmem>>, %arg5: memref<64x128xf32, #tpu.memory_space<vmem>>) attributes {dimension_semantics = [#tpu.dimension_semantics<arbitrary>], iteration_bounds = array<i64: 1>, scalar_prefetch = 0 : i64, scratch_operands = 0 : i64, tpu.core_type = #tpu.core_type<tc>, window_params = [{pipeline_mode = #tpu.pipeline_mode<synchronous>, transform_indices = @transform_0, window_bounds = array<i64: 128, 128>}, {pipeline_mode = #tpu.pipeline_mode<synchronous>, transform_indices = @transform_1, window_bounds = array<i64: 128, 128>}, {pipeline_mode = #tpu.pipeline_mode<synchronous>, transform_indices = @transform_2, window_bounds = array<i64: 64, 128>}, {pipeline_mode = #tpu.pipeline_mode<synchronous>, transform_indices = @transform_3, window_bounds = array<i64: 1, 128>}, {pipeline_mode = #tpu.pipeline_mode<synchronous>, transform_indices = @transform_4, window_bounds = array<i64: 64, 128>}]} {
    %c0 = arith.constant 0 : index
    %c0_0 = arith.constant 0 : index
    %0 = vector.load %arg1[%c0, %c0_0] : memref<128x128xbf16, #tpu.memory_space<vmem>>, vector<128x128xbf16>
    %c0_1 = arith.constant 0 : index
    %c0_2 = arith.constant 0 : index
    %1 = vector.load %arg2[%c0_1, %c0_2] : memref<128x128xbf16, #tpu.memory_space<vmem>>, vector<128x128xbf16>
    %cst = arith.constant dense<0.000000e+00> : vector<128x128xf32>
    %2 = tpu.matmul %0, %1, %cst {dimension_numbers = #tpu.dot_dimension_numbers<[1], [0], [0], [1], [0, 0, 1, 1], [], []>} : vector<128x128xbf16>, vector<128x128xbf16>, vector<128x128xf32> -> vector<128x128xf32>
    %3 = arith.truncf %2 : vector<128x128xf32> to vector<128x128xbf16>
    %c0_3 = arith.constant 0 : index
    %c0_4 = arith.constant 0 : index
    %4 = vector.load %arg3[%c0_3, %c0_4] : memref<64x128xf32, #tpu.memory_space<vmem>>, vector<64x128xf32>
    %5 = arith.truncf %4 : vector<64x128xf32> to vector<64x128xbf16>
    %cst_5 = arith.constant dense<0.000000e+00> : vector<64x128xf32>
    %6 = tpu.matmul %5, %3, %cst_5 {dimension_numbers = #tpu.dot_dimension_numbers<[1], [0], [0], [1], [0, 0, 1, 1], [], []>} : vector<64x128xbf16>, vector<128x128xbf16>, vector<64x128xf32> -> vector<64x128xf32>
    %c0_6 = arith.constant 0 : index
    %c0_7 = arith.constant 0 : index
    %7 = vector.load %arg4[%c0_6, %c0_7] : memref<1x128xf32, #tpu.memory_space<vmem>>, vector<1x128xf32>
    %8 = vector.broadcast %7 : vector<1x128xf32> to vector<64x128xf32>
    %9 = arith.addf %6, %8 : vector<64x128xf32>
    %c0_8 = arith.constant 0 : index
    %c0_9 = arith.constant 0 : index
    %10 = vector.load %arg5[%c0_8, %c0_9] : memref<64x128xf32, #tpu.memory_space<vmem>>, vector<64x128xf32>
    tpu.vector_store %arg5[%c0_8, %c0_9], %9 {strides = array<i32>} : memref<64x128xf32, #tpu.memory_space<vmem>>, vector<64x128xf32>,
    return
  }
  func.func @transform_0(%arg0: i32) -> (i32, i32) {
    %c0_i32 = arith.constant 0 : i32
    %c0_i32_0 = arith.constant 0 : i32
    %c0_i32_1 = arith.constant 0 : i32
    return %c0_i32, %c0_i32_0 : i32, i32
  }
  func.func @transform_1(%arg0: i32) -> (i32, i32) {
    %c0_i32 = arith.constant 0 : i32
    %c0_i32_0 = arith.constant 0 : i32
    %c0_i32_1 = arith.constant 0 : i32
    return %c0_i32, %c0_i32_0 : i32, i32
  }
  func.func @transform_2(%arg0: i32) -> (i32, i32) {
    %c0_i32 = arith.constant 0 : i32
    %c0_i32_0 = arith.constant 0 : i32
    %c0_i32_1 = arith.constant 0 : i32
    return %c0_i32, %c0_i32_0 : i32, i32
  }
  func.func @transform_3(%arg0: i32) -> (i32, i32) {
    %c0_i32 = arith.constant 0 : i32
    %c0_i32_0 = arith.constant 0 : i32
    %c0_i32_1 = arith.constant 0 : i32
    return %c0_i32, %c0_i32_0 : i32, i32
  }
  func.func @transform_4(%arg0: i32) -> (i32, i32) {
    %c0_i32 = arith.constant 0 : i32
    %c0_i32_0 = arith.constant 0 : i32
    %c0_i32_1 = arith.constant 0 : i32
    return %c0_i32, %c0_i32_0 : i32, i32
  }
}

</mosaic_0001>

<llo_original>
// kernel: tpu_custom_call.1
$region0: #{tpu_custom_call.1}
  #allocation0 [shape = 'u32[]', space=smem, size = 0x4, offset = 0x4, fixed_abs, tag = 'smem constant byte address 0x4 - core index']
  #allocation1 [shape = 'u32[72,128]{1,0:T(1,128)}', space=vmem, size = 0x9000, scoped, tag = 'internal scratch']
  %s0 = inlined_call_operand.hbm [shape: bf16[128,128], index: 0, kind: input, shape index: {}]
  %s1 = inlined_call_operand.hbm [shape: bf16[128,128], index: 1, kind: input, shape index: {}]
  %s2 = inlined_call_operand.hbm [shape: f32[64,128], index: 2, kind: input, shape index: {}]
  %s3 = inlined_call_operand.vmem [shape: f32[1,128], index: 3, kind: input, shape index: {}]
  %s4 = inlined_call_operand.hbm [shape: f32[64,128], index: 4, kind: output, shape index: {}]
  %s5 = sld [smem:[#allocation0]]
  $region38: #{tpu_custom_call.1} parent=0
    _
  %s7 = ssub.s32 1, %s5
  %s8 = scalar_select 0, %s7, %s5
  $region1: #{tpu_custom_call.1} parent=0
    #allocation2 [shape = 'u8[32768]{0}', space=vmem, size = 0x8000, scoped, tag = 'input window, operand 0, single buffered']
    #allocation3 [shape = 's32[1]{0}', space=sflag, size = 0x4, scoped, tag = 'scoped memory for tpu_custom_call.1']
    #allocation4 [shape = 's32[1]{0}', space=sflag, size = 0x4, scoped, tag = 'scoped memory for tpu_custom_call.1']
    #allocation5 [shape = 'u8[32768]{0}', space=vmem, size = 0x8000, scoped, tag = 'input window, operand 1, single buffered']
    #allocation6 [shape = 's32[1]{0}', space=sflag, size = 0x4, scoped, tag = 'scoped memory for tpu_custom_call.1']
    #allocation7 [shape = 'u8[32768]{0}', space=vmem, size = 0x8000, scoped, tag = 'input window, operand 2, single buffered']
    #allocation8 [shape = 'u8[32768]{0}', space=vmem, size = 0x8000, scoped, tag = 'output window, operand 0, single buffered']
    %9 = vsyncpa [#allocation3], 0
    %10 = vsyncpa [#allocation6], 0
    %11 = vsyncpa [#allocation4], 0
    // Predicated region
    $region2: #{tpu_custom_call.1} parent=1 // pred_check
      _
    $region3: #{tpu_custom_call.1} parent=1 // pred_check_branch
      %13 = sbr.rel (0) target = $region5
    $region4: #{tpu_custom_call.1} parent=1 // pred_region
      %15 = vsyncadd [#allocation3], 0
      %s16 = sshll.u32 %s0, 4
      %s17 = int_to_ptr.hbm [resolvable:$true] %s16
      %s18 = sshll.u32 [#allocation2], 4
      %s19 = int_to_ptr.vmem [resolvable:$true] %s18
      %24 = dma.hbm_to_vmem [thread:$0]  %s17, 1024, %s19, [#allocation3], 64, 64, 4
    $region5: #{tpu_custom_call.1} parent=1 // pred_fallthru
      _
    // Predicated region
    $region6: #{tpu_custom_call.1} parent=1 // pred_check
      _
    $region7: #{tpu_custom_call.1} parent=1 // pred_check_branch
      %26 = sbr.rel (0) target = $region9
    $region8: #{tpu_custom_call.1} parent=1 // pred_region
      %28 = vsyncadd [#allocation6], 0
      %s29 = sshll.u32 %s1, 4
      %s30 = int_to_ptr.hbm [resolvable:$true] %s29
      %s31 = sshll.u32 [#allocation5], 4
      %s32 = int_to_ptr.vmem [resolvable:$true] %s31
      %37 = dma.hbm_to_vmem [thread:$0]  %s30, 1024, %s32, [#allocation6], 64, 64, 4
    $region9: #{tpu_custom_call.1} parent=1 // pred_fallthru
      _
    // Predicated region
    $region10: #{tpu_custom_call.1} parent=1 // pred_check
      _
    $region11: #{tpu_custom_call.1} parent=1 // pred_check_branch
      %39 = sbr.rel (0) target = $region13
    $region12: #{tpu_custom_call.1} parent=1 // pred_region
      %41 = vsyncadd [#allocation6], 0
      %s42 = sshll.u32 %s2, 4
      %s43 = int_to_ptr.hbm [resolvable:$true] %s42
      %s44 = sshll.u32 [#allocation7], 4
      %s45 = int_to_ptr.vmem [resolvable:$true] %s44
      %50 = dma.hbm_to_vmem [thread:$0]  %s43, 1024, %s45, [#allocation6], 128, 128, 8
    $region13: #{tpu_custom_call.1} parent=1 // pred_fallthru
      _
    // Predicated region
    $region14: #{tpu_custom_call.1} parent=1 // pred_check
      _
    $region15: #{tpu_custom_call.1} parent=1 // pred_check_branch
      %52 = sbr.rel (0) target = $region17
    $region16: #{tpu_custom_call.1} parent=1 // pred_region
      _
    $region17: #{tpu_custom_call.1} parent=1 // pred_fallthru
      _
    // Predicated region
    $region18: #{tpu_custom_call.1} parent=1 // pred_check
      _
    $region19: #{tpu_custom_call.1} parent=1 // pred_check_branch
      %54 = sbr.rel (0) target = $region21
    $region20: #{tpu_custom_call.1} parent=1 // pred_region
      %56 = dma.done [#allocation3], 1024
    $region21: #{tpu_custom_call.1} parent=1 // pred_fallthru
      _
    // Predicated region
    $region22: #{tpu_custom_call.1} parent=1 // pred_check
      _
    $region23: #{tpu_custom_call.1} parent=1 // pred_check_branch
      %58 = sbr.rel (0) target = $region25
    $region24: #{tpu_custom_call.1} parent=1 // pred_region
      %60 = dma.done [#allocation6], 1024
    $region25: #{tpu_custom_call.1} parent=1 // pred_fallthru
      _
    // Predicated region
    $region26: #{tpu_custom_call.1} parent=1 // pred_check
      _
    $region27: #{tpu_custom_call.1} parent=1 // pred_check_branch
      %62 = sbr.rel (0) target = $region29
    $region28: #{tpu_custom_call.1} parent=1 // pred_region
      %64 = dma.done [#allocation6], 1024
    $region29: #{tpu_custom_call.1} parent=1 // pred_fallthru
      _
    %v65 = vld [vmem:[#allocation2] sm:$0xf]
    %v66 = vld [vmem:[#allocation2 + $0x4] sm:$0xf]
    %v67 = vld [vmem:[#allocation2 + $0x8] sm:$0xf]
    %v68 = vld [vmem:[#allocation2 + $0xc] sm:$0xf]
    %v69 = vld [vmem:[#allocation2 + $0x10] sm:$0xf]
    %v70 = vld [vmem:[#allocation2 + $0x14] sm:$0xf]
    %v71 = vld [vmem:[#allocation2 + $0x18] sm:$0xf]
    %v72 = vld [vmem:[#allocation2 + $0x1c] sm:$0xf]
    %v73 = vld [vmem:[#allocation2 + $0x20] sm:$0xf]
    %v74 = vld [vmem:[#allocation2 + $0x24] sm:$0xf]
    %v75 = vld [vmem:[#allocation2 + $0x28] sm:$0xf]
    %v76 = vld [vmem:[#allocation2 + $0x2c] sm:$0xf]
    %v77 = vld [vmem:[#allocation2 + $0x30] sm:$0xf]
    %v78 = vld [vmem:[#allocation2 + $0x34] sm:$0xf]
    %v79 = vld [vmem:[#allocation2 + $0x38] sm:$0xf]
    %v80 = vld [vmem:[#allocation2 + $0x3c] sm:$0xf]
    %v81 = vld [vmem:[#allocation5] sm:$0xf]
    %v82 = vld [vmem:[#allocation5 + $0x4] sm:$0xf]
    %v83 = vld [vmem:[#allocation5 + $0x8] sm:$0xf]
    %v84 = vld [vmem:[#allocation5 + $0xc] sm:$0xf]
    %v85 = vld [vmem:[#allocation5 + $0x10] sm:$0xf]
    %v86 = vld [vmem:[#allocation5 + $0x14] sm:$0xf]
    %v87 = vld [vmem:[#allocation5 + $0x18] sm:$0xf]
    %v88 = vld [vmem:[#allocation5 + $0x1c] sm:$0xf]
    %v89 = vld [vmem:[#allocation5 + $0x20] sm:$0xf]
    %v90 = vld [vmem:[#allocation5 + $0x24] sm:$0xf]
    %v91 = vld [vmem:[#allocation5 + $0x28] sm:$0xf]
    %v92 = vld [vmem:[#allocation5 + $0x2c] sm:$0xf]
    %v93 = vld [vmem:[#allocation5 + $0x30] sm:$0xf]
    %v94 = vld [vmem:[#allocation5 + $0x34] sm:$0xf]
    %v95 = vld [vmem:[#allocation5 + $0x38] sm:$0xf]
    %v96 = vld [vmem:[#allocation5 + $0x3c] sm:$0xf]
    %v113 = vunpack.c.l.b16 %v65
    %v114 = vunpack.c.l.b16 %v66
    %v115 = vunpack.c.l.b16 %v67
    %v116 = vunpack.c.l.b16 %v68
    %v117 = vunpack.c.l.b16 %v69
    %v118 = vunpack.c.l.b16 %v70
    %v119 = vunpack.c.l.b16 %v71
    %v120 = vunpack.c.l.b16 %v72
    %v121 = vunpack.c.l.b16 %v73
    %v122 = vunpack.c.l.b16 %v74
    %v123 = vunpack.c.l.b16 %v75
    %v124 = vunpack.c.l.b16 %v76
    %v125 = vunpack.c.l.b16 %v77
    %v126 = vunpack.c.l.b16 %v78
    %v127 = vunpack.c.l.b16 %v79
    %v128 = vunpack.c.l.b16 %v80
    %v129 = vpack.c.b16 %v114, %v113
    %v130 = vpack.c.b16 %v116, %v115
    %v131 = vpack.c.b16 %v118, %v117
    %v132 = vpack.c.b16 %v120, %v119
    %v133 = vpack.c.b16 %v122, %v121
    %v134 = vpack.c.b16 %v124, %v123
    %v135 = vpack.c.b16 %v126, %v125
    %v136 = vpack.c.b16 %v128, %v127
    %v161 = vunpack.c.l.b16 %v81
    %v162 = vunpack.c.l.b16 %v82
    %v163 = vunpack.c.l.b16 %v83
    %v164 = vunpack.c.l.b16 %v84
    %v165 = vunpack.c.l.b16 %v85
    %v166 = vunpack.c.l.b16 %v86
    %v167 = vunpack.c.l.b16 %v87
    %v168 = vunpack.c.l.b16 %v88
    %v169 = vunpack.c.l.b16 %v89
    %v170 = vunpack.c.l.b16 %v90
    %v171 = vunpack.c.l.b16 %v91
    %v172 = vunpack.c.l.b16 %v92
    %v173 = vunpack.c.l.b16 %v93
    %v174 = vunpack.c.l.b16 %v94
    %v175 = vunpack.c.l.b16 %v95
    %v176 = vunpack.c.l.b16 %v96
    %v177 = vpack.c.b16 %v162, %v161
    %v178 = vpack.c.b16 %v164, %v163
    %v179 = vpack.c.b16 %v166, %v165
    %v180 = vpack.c.b16 %v168, %v167
    %v181 = vpack.c.b16 %v170, %v169
    %v182 = vpack.c.b16 %v172, %v171
    %v183 = vpack.c.b16 %v174, %v173
    %v184 = vpack.c.b16 %v176, %v175
    %193 = vmatpush.bf16.msra.mxu0 %v184
    %194 = vmatpush.bf16.msra.mxu0 %v183
    %195 = vmatpush.bf16.msra.mxu0 %v182
    %196 = vmatpush.bf16.msra.mxu0 %v181
    %197 = vmatpush.bf16.msra.mxu0 %v180
    %198 = vmatpush.bf16.msra.mxu0 %v179
    %199 = vmatpush.bf16.msra.mxu0 %v178
    %200 = vmatpush.bf16.msra.mxu0 %v177
    %201 = vmatmul.bf16.gmra.mxu0 %v129
    %v202 = vpop.f32.mrf.mxu0
    %v203 = vadd.f32 0.0, %v202
    %v204 = vpop.f32.mrf.mxu0
    %v205 = vadd.f32 0.0, %v204
    %206 = vmatmul.bf16.gmra.mxu0 %v130
    %v207 = vpop.f32.mrf.mxu0
    %v208 = vadd.f32 0.0, %v207
    %v209 = vpop.f32.mrf.mxu0
    %v210 = vadd.f32 0.0, %v209
    %211 = vmatmul.bf16.gmra.mxu0 %v131
    %v212 = vpop.f32.mrf.mxu0
    %v213 = vadd.f32 0.0, %v212
    %v214 = vpop.f32.mrf.mxu0
    %v215 = vadd.f32 0.0, %v214
    %216 = vmatmul.bf16.gmra.mxu0 %v132
    %v217 = vpop.f32.mrf.mxu0
    %v218 = vadd.f32 0.0, %v217
    %v219 = vpop.f32.mrf.mxu0
    %v220 = vadd.f32 0.0, %v219
    %221 = vmatmul.bf16.gmra.mxu0 %v133
    %v222 = vpop.f32.mrf.mxu0
    %v223 = vadd.f32 0.0, %v222
    %v224 = vpop.f32.mrf.mxu0
    %v225 = vadd.f32 0.0, %v224
    %226 = vmatmul.bf16.gmra.mxu0 %v134
    %v227 = vpop.f32.mrf.mxu0
    %v228 = vadd.f32 0.0, %v227
    %v229 = vpop.f32.mrf.mxu0
    %v230 = vadd.f32 0.0, %v229
    %231 = vmatmul.bf16.gmra.mxu0 %v135
    %v232 = vpop.f32.mrf.mxu0
    %v233 = vadd.f32 0.0, %v232
    %v234 = vpop.f32.mrf.mxu0
    %v235 = vadd.f32 0.0, %v234
    %236 = vmatmul.bf16.gmra.mxu0 %v136
    %v237 = vpop.f32.mrf.mxu0
    %v238 = vadd.f32 0.0, %v237
    %v239 = vpop.f32.mrf.mxu0
    %v240 = vadd.f32 0.0, %v239
    %241 = vdwg.mxu0
    %v242 = vpack.c.bf16 %v205, %v203
    %v243 = vpack.c.bf16 %v210, %v208
    %v244 = vpack.c.bf16 %v215, %v213
    %v245 = vpack.c.bf16 %v220, %v218
    %v246 = vpack.c.bf16 %v225, %v223
    %v247 = vpack.c.bf16 %v230, %v228
    %v248 = vpack.c.bf16 %v235, %v233
    %v249 = vpack.c.bf16 %v240, %v238
    %v250 = vld [vmem:[#allocation7] sm:$0xff]
    %v251 = vld [vmem:[#allocation7 + $0x8] sm:$0xff]
    %v252 = vld [vmem:[#allocation7 + $0x10] sm:$0xff]
    %v253 = vld [vmem:[#allocation7 + $0x18] sm:$0xff]
    %v254 = vld [vmem:[#allocation7 + $0x20] sm:$0xff]
    %v255 = vld [vmem:[#allocation7 + $0x28] sm:$0xff]
    %v256 = vld [vmem:[#allocation7 + $0x30] sm:$0xff]
    %v257 = vld [vmem:[#allocation7 + $0x38] sm:$0xff]
    %v258 = vpack.c.bf16 %v251, %v250
    %v259 = vpack.c.bf16 %v253, %v252
    %v260 = vpack.c.bf16 %v255, %v254
    %v261 = vpack.c.bf16 %v257, %v256
    %v262 = vld [vmem:[%s3] sm:$0x1]
    %v264 = vperm.slane %v262, 0
    %266 = vmatpush.bf16.msra.mxu0 %v249
    %267 = vmatpush.bf16.msra.mxu0 %v248
    %268 = vmatpush.bf16.msra.mxu0 %v247
    %269 = vmatpush.bf16.msra.mxu0 %v246
    %270 = vmatpush.bf16.msra.mxu0 %v245
    %271 = vmatpush.bf16.msra.mxu0 %v244
    %272 = vmatpush.bf16.msra.mxu0 %v243
    %273 = vmatpush.bf16.msra.mxu0 %v242
    %274 = vmatmul.bf16.gmra.mxu0 %v258
    %v275 = vpop.f32.mrf.mxu0
    %v276 = vadd.f32 %v264, %v275
    %v277 = vpop.f32.mrf.mxu0
    %v278 = vadd.f32 %v264, %v277
    %279 = vmatmul.bf16.gmra.mxu0 %v259
    %v280 = vpop.f32.mrf.mxu0
    %v281 = vadd.f32 %v264, %v280
    %v282 = vpop.f32.mrf.mxu0
    %v283 = vadd.f32 %v264, %v282
    %284 = vmatmul.bf16.gmra.mxu0 %v260
    %v285 = vpop.f32.mrf.mxu0
    %v286 = vadd.f32 %v264, %v285
    %v287 = vpop.f32.mrf.mxu0
    %v288 = vadd.f32 %v264, %v287
    %289 = vmatmul.bf16.gmra.mxu0 %v261
    %v290 = vpop.f32.mrf.mxu0
    %v291 = vadd.f32 %v264, %v290
    %v292 = vpop.f32.mrf.mxu0
    %v293 = vadd.f32 %v264, %v292
    %294 = vdwg.mxu0
    %295 = vst [vmem:[#allocation8] sm:$0xff] %v276
    %296 = vst [vmem:[#allocation8 + $0x8] sm:$0xff] %v278
    %297 = vst [vmem:[#allocation8 + $0x10] sm:$0xff] %v281
    %298 = vst [vmem:[#allocation8 + $0x18] sm:$0xff] %v283
    %299 = vst [vmem:[#allocation8 + $0x20] sm:$0xff] %v286
    %300 = vst [vmem:[#allocation8 + $0x28] sm:$0xff] %v288
    %301 = vst [vmem:[#allocation8 + $0x30] sm:$0xff] %v291
    %302 = vst [vmem:[#allocation8 + $0x38] sm:$0xff] %v293
    // Predicated region
    $region30: #{tpu_custom_call.1} parent=1 // pred_check
      _
    $region31: #{tpu_custom_call.1} parent=1 // pred_check_branch
      %304 = sbr.rel (0) target = $region33
    $region32: #{tpu_custom_call.1} parent=1 // pred_region
      %306 = vsyncadd [#allocation4], 0
      %s307 = sshll.u32 [#allocation8], 4
      %s308 = int_to_ptr.vmem [resolvable:$true] %s307
      %s309 = sshll.u32 %s4, 4
      %s310 = int_to_ptr.hbm [resolvable:$true] %s309
      %315 = dma.vmem_to_hbm [thread:$0]  %s308, 1024, %s310, [#allocation4], 128, 128, 8
    $region33: #{tpu_custom_call.1} parent=1 // pred_fallthru
      _
    // Predicated region
    $region34: #{tpu_custom_call.1} parent=1 // pred_check
      _
    $region35: #{tpu_custom_call.1} parent=1 // pred_check_branch
      %317 = sbr.rel (0) target = $region37
    $region36: #{tpu_custom_call.1} parent=1 // pred_region
      %319 = dma.done [#allocation4], 1024
    $region37: #{tpu_custom_call.1} parent=1 // pred_fallthru
      _
    %320 = vsyncpa [#allocation3], 1
    %321 = vsyncpa [#allocation6], 1
    %322 = vsyncpa [#allocation4], 1

</llo_original>
